<compile_context>
chip_gen: v7x
topology: tpu7x:2x2x1
jax: 0.10.0
libtpu: 0.0.40
codegen_flags: <defaults>
</compile_context>

<pallas_src>
import jax
import jax.numpy as jnp
from jax.experimental import pallas as pl
from jax.experimental.pallas import tpu as pltpu


# ---------------------------------------------------------------------------
# kernels
# ---------------------------------------------------------------------------
def _matmul_kernel(x_ref, w_ref, o_ref, acc_ref):
    # x: (tm, tk) bf16, w: (tk, tn) bf16 -> acc (f32, MXU accumulate)
    k = pl.program_id(2)
    prod = jnp.dot(x_ref[...], w_ref[...], preferred_element_type=jnp.float32)

    @pl.when(k == 0)
    def _():
        acc_ref[...] = prod          # write, no zero-init + add

    @pl.when(k != 0)
    def _():
        acc_ref[...] += prod

    @pl.when(k == pl.num_programs(2) - 1)
    def _():
        o_ref[...] = acc_ref[...].astype(o_ref.dtype)


def _matmul_quant_kernel(x_ref, w_ref, s_ref, o_ref, acc_ref):
    # x: (tm, tk) bf16, w: (tk, tn) int8, s: (1, tn) f32
    k = pl.program_id(2)
    # int8 -> bf16 is exact (|v| <= 127) and cheap on the VPU; keeps the matmul
    # on the bf16 MXU path on every TPU generation while the weight stays int8
    # in HBM/VMEM (half the DMA bytes vs bf16, 1/4 vs f32).
    w = w_ref[...].astype(jnp.bfloat16)
    prod = jnp.dot(x_ref[...], w, preferred_element_type=jnp.float32)

    @pl.when(k == 0)
    def _():
        acc_ref[...] = prod

    @pl.when(k != 0)
    def _():
        acc_ref[...] += prod

    @pl.when(k == pl.num_programs(2) - 1)
    def _():
        # per-output-column scaler applied once in the epilogue
        o_ref[...] = (acc_ref[...] * s_ref[...]).astype(o_ref.dtype)


# ---------------------------------------------------------------------------
# tiling helpers
# ---------------------------------------------------------------------------
_MAX_TK = 2048
_MAX_TN = 1024
_MAX_TM = 1024
_VMEM_TILE_BUDGET = 40 * 1024 * 1024   # per-step working set (v7x-safe, 64 MiB phys)
_VMEM_LIMIT_CAP = 56 * 1024 * 1024     # explicit scoped limit, < v7x physical VMEM


def _round_up(x, m):
    return ((x + m - 1) // m) * m


def _cdiv(a, b):
    return -(-a // b)


def _choose_tile(dim, align, max_tile):
    """Pick a tile (multiple of `align`, <= max_tile); the dim is then padded up
    to a multiple of the tile.  Prefers minimal padded size, then fewer steps."""
    full = _round_up(dim, align)
    if full <= max_tile:
        return full
    best_t, best_key = align, None
    t = (max_tile // align) * align
    while t >= align:
        steps = _cdiv(dim, t)
        key = (steps * t, steps)
        if best_key is None or key < best_key:
            best_key, best_t = key, t
        t -= align
    return best_t


# ---------------------------------------------------------------------------
# init-time weight preparation (call ONCE, not per forward)
# ---------------------------------------------------------------------------
def prepare_linear_params(weight, weight_scaler=None):
    """One-time weight transform: transpose to (K, N), pad to tile multiples,
    cast to bf16 (non-quant).  Hoisted out of the per-call path so the forward
    pass never re-reads/re-writes the full weight in HBM."""
    n, k = weight.shape
    tk = _choose_tile(k, 128, _MAX_TK)
    tn = _choose_tile(n, 128, _MAX_TN)
    k_pad = _round_up(k, tk)
    n_pad = _round_up(n, tn)

    if weight_scaler is None:
        wt = weight.T.astype(jnp.bfloat16)       # (K, N) bf16
        scaler = None
    else:
        wt = weight.T                            # (K, N) int8, dequant-cast in-kernel
        scaler = weight_scaler.astype(jnp.float32).reshape(1, n)
        if n_pad != n:
            scaler = jnp.pad(scaler, ((0, 0), (0, n_pad - n)))
    if k_pad != k or n_pad != n:
        wt = jnp.pad(wt, ((0, k_pad - k), (0, n_pad - n)))

    return {
        "wt": wt, "scaler": scaler,
        "in_features": k, "out_features": n,
        "tk": tk, "tn": tn,
    }


# ---------------------------------------------------------------------------
# forward
# ---------------------------------------------------------------------------
def linear_forward(x, params):
    """y = x @ W.T (optionally * per-output scaler), using prepared params."""
    wt, scaler = params["wt"], params["scaler"]
    k, n = params["in_features"], params["out_features"]
    tk, tn = params["tk"], params["tn"]
    k_pad, n_pad = wt.shape

    *lead, kx = x.shape
    assert kx == k, "in_features mismatch"
    m = 1
    for d in lead:
        m *= d
    out_dtype = x.dtype
    out_bytes = jnp.dtype(out_dtype).itemsize
    w_bytes = jnp.dtype(wt.dtype).itemsize

    # ---- M tile under an explicit, generation-safe VMEM budget ----
    w_tile_bytes = 2 * tk * tn * w_bytes                       # double-buffered W
    row_bytes = 2 * tk * 2 + 2 * tn * out_bytes + tn * 4       # x(bf16)+out+acc per M-row
    tm_cap = (_VMEM_TILE_BUDGET - w_tile_bytes) // row_bytes
    tm_cap = max(16, min(_MAX_TM, (tm_cap // 16) * 16))
    tm = _choose_tile(m, 16, tm_cap)                           # M padded to mult of 16 (bf16 packing)
    m_pad = _round_up(m, tm)

    grid_m, grid_n, grid_k = m_pad // tm, n_pad // tn, k_pad // tk

    # v7x has 2 TensorCores sharded over "parallel" grid axes: make sure there
    # are >= 2 parallel blocks when the whole padded output fits one tile.
    if grid_m * grid_n == 1:
        if tn >= 256:
            tn = tn // 2 if tn % 256 == 0 else 128
            grid_n = n_pad // tn
        elif tm >= 32:
            tm //= 2
            grid_m = m_pad // tm

    # ---- activation: (M, K) bf16, padded (cheap relative to the weight) ----
    x2 = x.reshape(m, k).astype(jnp.bfloat16)
    if m_pad != m or k_pad != k:
        x2 = jnp.pad(x2, ((0, m_pad - m), (0, k_pad - k)))

    x_spec = pl.BlockSpec((tm, tk), lambda i, j, kk: (i, kk))
    w_spec = pl.BlockSpec((tk, tn), lambda i, j, kk: (kk, j))
    o_spec = pl.BlockSpec((tm, tn), lambda i, j, kk: (i, j))

    est_vmem = (w_tile_bytes + 2 * tm * tk * 2 + 2 * tm * tn * out_bytes
                + tm * tn * 4)
    vmem_limit = int(min(_VMEM_LIMIT_CAP,
                         max(32 * 1024 * 1024, est_vmem * 5 // 4)))
    cparams = pltpu.CompilerParams(
        dimension_semantics=("parallel", "parallel", "arbitrary"),
        vmem_limit_bytes=vmem_limit,
    )
    cost = pl.CostEstimate(
        flops=2 * m_pad * n_pad * k_pad,
        transcendentals=0,
        bytes_accessed=(m_pad * k_pad * 2 * grid_n
                        + k_pad * n_pad * w_bytes * grid_m
                        + m_pad * n_pad * out_bytes),
    )
    scratch = [pltpu.VMEM((tm, tn), jnp.float32)]
    grid = (grid_m, grid_n, grid_k)

    if scaler is None:
        out = pl.pallas_call(
            _matmul_kernel,
            out_shape=jax.ShapeDtypeStruct((m_pad, n_pad), out_dtype),
            grid_spec=pltpu.PrefetchScalarGridSpec(
                num_scalar_prefetch=0,
                grid=grid,
                in_specs=[x_spec, w_spec],
                out_specs=o_spec,
                scratch_shapes=scratch,
            ),
            compiler_params=cparams,
            cost_estimate=cost,
        )(x2, wt)
    else:
        s_spec = pl.BlockSpec((1, tn), lambda i, j, kk: (0, j))
        out = pl.pallas_call(
            _matmul_quant_kernel,
            out_shape=jax.ShapeDtypeStruct((m_pad, n_pad), out_dtype),
            grid_spec=pltpu.PrefetchScalarGridSpec(
                num_scalar_prefetch=0,
                grid=grid,
                in_specs=[x_spec, w_spec, s_spec],
                out_specs=o_spec,
                scratch_shapes=scratch,
            ),
            compiler_params=cparams,
            cost_estimate=cost,
        )(x2, wt, scaler)

    out = out[:m, :n]
    return out.reshape(*lead, n)


def linear(x, weight, weight_scaler=None):
    """Drop-in one-shot convenience.  Hot paths should call
    prepare_linear_params() once at init and linear_forward() per step."""
    return linear_forward(x, prepare_linear_params(weight, weight_scaler))


# ---------------------------------------------------------------------------
# self-test
# ---------------------------------------------------------------------------
if __name__ == "__main__":
    key = jax.random.PRNGKey(0)
    k1, k2, k3, k4, k5, k6 = jax.random.split(key, 6)

    # ---- non-quantized path (quant=False), small shape ----
    in_features, out_features = 32, 64
    x = jax.random.normal(k1, (2, 8, in_features), dtype=jnp.float32)
    w = jax.random.normal(k2, (out_features, in_features), dtype=jnp.float32) * 0.05

    params = prepare_linear_params(w)                 # init-time weight transform
    y = linear_forward(x, params)
    jax.block_until_ready(y)
    assert y.shape == (2, 8, out_features)
    y_ref_bf16 = jnp.dot(
        x.astype(jnp.bfloat16), w.astype(jnp.bfloat16).T,
        preferred_element_type=jnp.float32,
    )
    assert jnp.allclose(y.reshape(-1, out_features),
                        y_ref_bf16.reshape(-1, out_features),
                        atol=1e-3, rtol=1e-3), "non-quant mismatch (bf16 ref)"
    assert jnp.allclose(y, x @ w.T, atol=2e-2, rtol=2e-2), "non-quant mismatch (f32 ref)"

    # ---- quantized path (quant=True) ----
    w_q = jax.random.randint(k3, (out_features, in_features), -128, 128).astype(jnp.int8)
    scaler = jax.random.uniform(k4, (out_features,), dtype=jnp.float32) * 0.01

    params_q = prepare_linear_params(w_q, scaler)
    y_q = linear_forward(x, params_q)
    jax.block_until_ready(y_q)
    assert y_q.shape == (2, 8, out_features)
    y_q_ref_bf16 = jnp.dot(
        x.astype(jnp.bfloat16), w_q.astype(jnp.bfloat16).T,
        preferred_element_type=jnp.float32,
    ) * scaler[None, :]
    assert jnp.allclose(y_q.reshape(-1, out_features),
                        y_q_ref_bf16.reshape(-1, out_features),
                        atol=1e-3, rtol=1e-3), "quant mismatch (bf16 ref)"
    assert jnp.allclose(y_q, x @ (w_q.astype(jnp.float32) * scaler[:, None]).T,
                        atol=5e-2, rtol=2e-2), "quant mismatch (f32 ref)"

    # ---- larger K: exercises multi-step K accumulation + megacore N split ----
    in2, out2 = 2304, 256
    x_b = jax.random.normal(k5, (2, 8, in2), dtype=jnp.float32)
    w_b = jax.random.normal(k6, (out2, in2), dtype=jnp.float32) * 0.05
    params_b = prepare_linear_params(w_b)
    y_b = linear_forward(x_b, params_b)
    jax.block_until_ready(y_b)
    y_b_ref = jnp.dot(
        x_b.astype(jnp.bfloat16).reshape(-1, in2), w_b.astype(jnp.bfloat16).T,
        preferred_element_type=jnp.float32,
    )
    assert y_b.shape == (2, 8, out2)
    assert jnp.allclose(y_b.reshape(-1, out2), y_b_ref, atol=1e-3, rtol=1e-3), \
        "non-quant mismatch (large-K shape)"

    print("KERNEL_OK")
</pallas_src>

<mosaic_0001>
module attributes {stable_mosaic.version = 11 : i64} {
  func.func @_matmul_kernel(%arg0: i32, %arg1: i32, %arg2: i32, %arg3: memref<16x128xbf16, #tpu.memory_space<vmem>>, %arg4: memref<128x128xbf16, #tpu.memory_space<vmem>>, %arg5: memref<16x128xf32, #tpu.memory_space<vmem>>, %arg6: memref<16x128xf32, #tpu.memory_space<vmem>>) attributes {dimension_semantics = [#tpu.dimension_semantics<parallel>, #tpu.dimension_semantics<parallel>, #tpu.dimension_semantics<arbitrary>], iteration_bounds = array<i64: 1, 1, 1>, scalar_prefetch = 0 : i64, scratch_operands = 1 : i64, tpu.core_type = #tpu.core_type<tc>, window_params = [{transform_indices = @transform_0, window_bounds = array<i64: 16, 128>}, {transform_indices = @transform_1, window_bounds = array<i64: 128, 128>}, {transform_indices = @transform_2, window_bounds = array<i64: 16, 128>}]} {
    %c0 = arith.constant 0 : index
    %c0_0 = arith.constant 0 : index
    %0 = vector.load %arg3[%c0, %c0_0] : memref<16x128xbf16, #tpu.memory_space<vmem>>, vector<16x128xbf16>
    %c0_1 = arith.constant 0 : index
    %c0_2 = arith.constant 0 : index
    %1 = vector.load %arg4[%c0_1, %c0_2] : memref<128x128xbf16, #tpu.memory_space<vmem>>, vector<128x128xbf16>
    %cst = arith.constant dense<0.000000e+00> : vector<16x128xf32>
    %2 = tpu.matmul %0, %1, %cst {dimension_numbers = #tpu.dot_dimension_numbers<[1], [0], [0], [1], [0, 0, 1, 1], [], []>} : vector<16x128xbf16>, vector<128x128xbf16>, vector<16x128xf32> -> vector<16x128xf32>
    %c0_i32 = arith.constant 0 : i32
    %3 = arith.cmpi eq, %arg2, %c0_i32 : i32
    %4 = arith.extui %3 : i1 to i32
    %c0_i32_3 = arith.constant 0 : i32
    %5 = arith.cmpi ne, %4, %c0_i32_3 : i32
    scf.if %5 {
      %c0_8 = arith.constant 0 : index
      %c0_9 = arith.constant 0 : index
      %12 = vector.load %arg6[%c0_8, %c0_9] : memref<16x128xf32, #tpu.memory_space<vmem>>, vector<16x128xf32>
      tpu.vector_store %arg6[%c0_8, %c0_9], %2 {strides = array<i32>} : memref<16x128xf32, #tpu.memory_space<vmem>>, vector<16x128xf32>,
    } else {
    }
    %c0_i32_4 = arith.constant 0 : i32
    %6 = arith.cmpi ne, %arg2, %c0_i32_4 : i32
    %7 = arith.extui %6 : i1 to i32
    %c0_i32_5 = arith.constant 0 : i32
    %8 = arith.cmpi ne, %7, %c0_i32_5 : i32
    scf.if %8 {
      %c0_8 = arith.constant 0 : index
      %c0_9 = arith.constant 0 : index
      %12 = vector.load %arg6[%c0_8, %c0_9] : memref<16x128xf32, #tpu.memory_space<vmem>>, vector<16x128xf32>
      %13 = arith.addf %12, %2 : vector<16x128xf32>
      %c0_10 = arith.constant 0 : index
      %c0_11 = arith.constant 0 : index
      %14 = vector.load %arg6[%c0_10, %c0_11] : memref<16x128xf32, #tpu.memory_space<vmem>>, vector<16x128xf32>
      tpu.vector_store %arg6[%c0_10, %c0_11], %13 {strides = array<i32>} : memref<16x128xf32, #tpu.memory_space<vmem>>, vector<16x128xf32>,
    } else {
    }
    %c0_i32_6 = arith.constant 0 : i32
    %9 = arith.cmpi eq, %arg2, %c0_i32_6 : i32
    %10 = arith.extui %9 : i1 to i32
    %c0_i32_7 = arith.constant 0 : i32
    %11 = arith.cmpi ne, %10, %c0_i32_7 : i32
    scf.if %11 {
      %c0_8 = arith.constant 0 : index
      %c0_9 = arith.constant 0 : index
      %12 = vector.load %arg6[%c0_8, %c0_9] : memref<16x128xf32, #tpu.memory_space<vmem>>, vector<16x128xf32>
      %c0_10 = arith.constant 0 : index
      %c0_11 = arith.constant 0 : index
      %13 = vector.load %arg5[%c0_10, %c0_11] : memref<16x128xf32, #tpu.memory_space<vmem>>, vector<16x128xf32>
      tpu.vector_store %arg5[%c0_10, %c0_11], %12 {strides = array<i32>} : memref<16x128xf32, #tpu.memory_space<vmem>>, vector<16x128xf32>,
    } else {
    }
    return
  }
  func.func @transform_0(%arg0: i32, %arg1: i32, %arg2: i32) -> (i32, i32) {
    %c0_i32 = arith.constant 0 : i32
    return %arg0, %arg2 : i32, i32
  }
  func.func @transform_1(%arg0: i32, %arg1: i32, %arg2: i32) -> (i32, i32) {
    %c0_i32 = arith.constant 0 : i32
    return %arg2, %arg1 : i32, i32
  }
  func.func @transform_2(%arg0: i32, %arg1: i32, %arg2: i32) -> (i32, i32) {
    %c0_i32 = arith.constant 0 : i32
    return %arg0, %arg1 : i32, i32
  }
}

</mosaic_0001>

<llo_original>
// kernel: tpu_custom_call.1
$region0: #{tpu_custom_call.1}
  #allocation0 [shape = 'u32[]', space=smem, size = 0x4, offset = 0x4, fixed_abs, tag = 'smem constant byte address 0x4 - core index']
  #allocation1 [shape = 'u32[144,128]{1,0:T(1,128)}', space=vmem, size = 0x12000, scoped, tag = 'internal scratch']
  #allocation2 [shape = 'f32[16,128]{1,0:T(8,128)}', space=vmem, size = 0x2000, scoped, tag = 'scratch operand']
  %s0 = inlined_call_operand.hbm [shape: bf16[16,128], index: 0, kind: input, shape index: {}]
  %s1 = inlined_call_operand.hbm [shape: bf16[128,128], index: 1, kind: input, shape index: {}]
  %s2 = inlined_call_operand.hbm [shape: f32[16,128], index: 2, kind: output, shape index: {}]
  %s3 = sld [smem:[#allocation0]]
  $region38: #{tpu_custom_call.1} parent=0
    _
  %s5 = ssub.s32 1, %s3
  %s6 = scalar_select 0, %s5, %s3
  $region1: #{tpu_custom_call.1} parent=0
    #allocation3 [shape = 'u8[4096]{0}', space=vmem, size = 0x1000, scoped, tag = 'input window, operand 0, single buffered']
    #allocation4 [shape = 's32[1]{0}', space=sflag, size = 0x4, scoped, tag = 'scoped memory for tpu_custom_call.1']
    #allocation5 [shape = 's32[1]{0}', space=sflag, size = 0x4, scoped, tag = 'scoped memory for tpu_custom_call.1']
    #allocation6 [shape = 'u8[32768]{0}', space=vmem, size = 0x8000, scoped, tag = 'input window, operand 1, single buffered']
    #allocation7 [shape = 's32[1]{0}', space=sflag, size = 0x4, scoped, tag = 'scoped memory for tpu_custom_call.1']
    #allocation8 [shape = 'u8[8192]{0}', space=vmem, size = 0x2000, scoped, tag = 'output window, operand 0, single buffered']
    %7 = vsyncpa [#allocation4], 0
    %8 = vsyncpa [#allocation7], 0
    %9 = vsyncpa [#allocation5], 0
    // Predicated region
    $region2: #{tpu_custom_call.1} parent=1 // pred_check
      _
    $region3: #{tpu_custom_call.1} parent=1 // pred_check_branch
      %11 = sbr.rel (0) target = $region5
    $region4: #{tpu_custom_call.1} parent=1 // pred_region
      %s13 = ssub.s32 128, 128
      %14 = vsyncadd [#allocation4], %s13
      %s15 = sshll.u32 [#allocation3], 4
      %s16 = int_to_ptr.vmem [resolvable:$true] %s15
      %21 = dma.hbm_to_vmem [thread:$0]  %s0, 128, %s16, [#allocation4], 64, 64, 4
    $region5: #{tpu_custom_call.1} parent=1 // pred_fallthru
      _
    // Predicated region
    $region6: #{tpu_custom_call.1} parent=1 // pred_check
      _
    $region7: #{tpu_custom_call.1} parent=1 // pred_check_branch
      %23 = sbr.rel (0) target = $region9
    $region8: #{tpu_custom_call.1} parent=1 // pred_region
      %s25 = ssub.s32 1024, 1024
      %26 = vsyncadd [#allocation7], %s25
      %s27 = sshll.u32 [#allocation6], 4
      %s28 = int_to_ptr.vmem [resolvable:$true] %s27
      %33 = dma.hbm_to_vmem [thread:$0]  %s1, 1024, %s28, [#allocation7], 64, 64, 4
    $region9: #{tpu_custom_call.1} parent=1 // pred_fallthru
      _
    // Predicated region
    $region10: #{tpu_custom_call.1} parent=1 // pred_check
      _
    $region11: #{tpu_custom_call.1} parent=1 // pred_check_branch
      %35 = sbr.rel (0) target = $region13
    $region12: #{tpu_custom_call.1} parent=1 // pred_region
      %36 = dma.done [#allocation4], 128
    $region13: #{tpu_custom_call.1} parent=1 // pred_fallthru
      _
    // Predicated region
    $region14: #{tpu_custom_call.1} parent=1 // pred_check
      _
    $region15: #{tpu_custom_call.1} parent=1 // pred_check_branch
      %38 = sbr.rel (0) target = $region17
    $region16: #{tpu_custom_call.1} parent=1 // pred_region
      %39 = dma.done [#allocation7], 1024
    $region17: #{tpu_custom_call.1} parent=1 // pred_fallthru
      _
    %v41 = vld [vmem:[#allocation3] sm:$0xf]
    %v42 = vld [vmem:[#allocation3 + $0x4] sm:$0xf]
    %v43 = vld [vmem:[#allocation6] sm:$0xf]
    %v44 = vld [vmem:[#allocation6 + $0x4] sm:$0xf]
    %v45 = vld [vmem:[#allocation6 + $0x8] sm:$0xf]
    %v46 = vld [vmem:[#allocation6 + $0xc] sm:$0xf]
    %v47 = vld [vmem:[#allocation6 + $0x10] sm:$0xf]
    %v48 = vld [vmem:[#allocation6 + $0x14] sm:$0xf]
    %v49 = vld [vmem:[#allocation6 + $0x18] sm:$0xf]
    %v50 = vld [vmem:[#allocation6 + $0x1c] sm:$0xf]
    %v51 = vld [vmem:[#allocation6 + $0x20] sm:$0xf]
    %v52 = vld [vmem:[#allocation6 + $0x24] sm:$0xf]
    %v53 = vld [vmem:[#allocation6 + $0x28] sm:$0xf]
    %v54 = vld [vmem:[#allocation6 + $0x2c] sm:$0xf]
    %v55 = vld [vmem:[#allocation6 + $0x30] sm:$0xf]
    %v56 = vld [vmem:[#allocation6 + $0x34] sm:$0xf]
    %v57 = vld [vmem:[#allocation6 + $0x38] sm:$0xf]
    %v58 = vld [vmem:[#allocation6 + $0x3c] sm:$0xf]
    %v61 = vunpack.c.l.b16 %v41
    %v62 = vunpack.c.l.b16 %v42
    %v63 = vpack.c.b16 %v62, %v61
    %v81 = vunpack.c.l.b16 %v43
    %v82 = vunpack.c.l.b16 %v44
    %v83 = vunpack.c.l.b16 %v45
    %v84 = vunpack.c.l.b16 %v46
    %v85 = vunpack.c.l.b16 %v47
    %v86 = vunpack.c.l.b16 %v48
    %v87 = vunpack.c.l.b16 %v49
    %v88 = vunpack.c.l.b16 %v50
    %v89 = vunpack.c.l.b16 %v51
    %v90 = vunpack.c.l.b16 %v52
    %v91 = vunpack.c.l.b16 %v53
    %v92 = vunpack.c.l.b16 %v54
    %v93 = vunpack.c.l.b16 %v55
    %v94 = vunpack.c.l.b16 %v56
    %v95 = vunpack.c.l.b16 %v57
    %v96 = vunpack.c.l.b16 %v58
    %v97 = vpack.c.b16 %v82, %v81
    %v98 = vpack.c.b16 %v84, %v83
    %v99 = vpack.c.b16 %v86, %v85
    %v100 = vpack.c.b16 %v88, %v87
    %v101 = vpack.c.b16 %v90, %v89
    %v102 = vpack.c.b16 %v92, %v91
    %v103 = vpack.c.b16 %v94, %v93
    %v104 = vpack.c.b16 %v96, %v95
    %113 = vmatprep.subr.bf16.mxu0 0
    %114 = vmatpush1.bf16.msra.mxu0 %v97
    %115 = vmatprep.subr.bf16.mxu0 0
    %116 = vmatpush1.bf16.msra.mxu0 %v98
    %117 = vmatprep.subr.bf16.mxu0 0
    %118 = vmatpush1.bf16.msra.mxu0 %v99
    %119 = vmatprep.subr.bf16.mxu0 0
    %120 = vmatpush1.bf16.msra.mxu0 %v100
    %121 = vmatprep.subr.bf16.mxu0 0
    %122 = vmatpush1.bf16.msra.mxu0 %v101
    %123 = vmatprep.subr.bf16.mxu0 0
    %124 = vmatpush1.bf16.msra.mxu0 %v102
    %125 = vmatprep.subr.bf16.mxu0 0
    %126 = vmatpush1.bf16.msra.mxu0 %v103
    %127 = vmatprep.subr.bf16.mxu0 0
    %128 = vmatpush1.bf16.msra.mxu0 %v104
    %129 = vmatprep.subr.bf16.mxu0 0
    %130 = vmatpush1.bf16.msra.mxu0 0
    %131 = vmatprep.subr.bf16.mxu0 0
    %132 = vmatpush1.bf16.msra.mxu0 0
    %133 = vmatprep.subr.bf16.mxu0 0
    %134 = vmatpush1.bf16.msra.mxu0 0
    %135 = vmatprep.subr.bf16.mxu0 0
    %136 = vmatpush1.bf16.msra.mxu0 0
    %137 = vmatprep.subr.bf16.mxu0 0
    %138 = vmatpush1.bf16.msra.mxu0 0
    %139 = vmatprep.subr.bf16.mxu0 0
    %140 = vmatpush1.bf16.msra.mxu0 0
    %141 = vmatprep.subr.bf16.mxu0 0
    %142 = vmatpush1.bf16.msra.mxu0 0
    %143 = vmatprep.subr.bf16.mxu0 0
    %144 = vmatpush1.bf16.msra.mxu0 0
    %145 = vmatprep.mubr.bf16.mxu0 0
    %146 = vmatmul.mubr.bf16.gmra.mrb[0].mxu0 %v63
    %v147 = vpop.f32.mrb[0].mxu0
    %v148 = vadd.f32 0.0, %v147
    %v149 = vpop.f32.mrb[0].mxu0
    %v150 = vpop.f32.mrb[0].mxu0
    %v151 = vadd.f32 0.0, %v150
    %v152 = vpop.f32.mrb[0].mxu0
    %153 = vdwg.mxu0
    %p154 = scmp.eq.s32.totalorder 0, 0
    // Predicated region
    $region18: #{tpu_custom_call.1} parent=1 // pred_check
      %p155 = pneg %p154
    $region19: #{tpu_custom_call.1} parent=1 // pred_check_branch
      %157 = sbr.rel (%p155) target = $region21
    $region20: #{tpu_custom_call.1} parent=1 // pred_region
      %158 = vst [vmem:[#allocation2] sm:$0xff] %v148
      %159 = vst [vmem:[#allocation2 + $0x8] sm:$0xff] %v151
    $region21: #{tpu_custom_call.1} parent=1 // pred_fallthru
      _
    %p160 = scmp.ne.s32.totalorder 0, 0
    // Predicated region
    $region22: #{tpu_custom_call.1} parent=1 // pred_check
      %p161 = pneg %p160
    $region23: #{tpu_custom_call.1} parent=1 // pred_check_branch
      %163 = sbr.rel (%p161) target = $region25
    $region24: #{tpu_custom_call.1} parent=1 // pred_region
      %v164 = vld [vmem:[#allocation2] sm:$0xff]
      %v165 = vld [vmem:[#allocation2 + $0x8] sm:$0xff]
      %v166 = vadd.f32 %v164, %v148
      %v167 = vadd.f32 %v165, %v151
      %168 = vst [vmem:[#allocation2] sm:$0xff] %v166
      %169 = vst [vmem:[#allocation2 + $0x8] sm:$0xff] %v167
    $region25: #{tpu_custom_call.1} parent=1 // pred_fallthru
      _
    // Predicated region
    $region26: #{tpu_custom_call.1} parent=1 // pred_check
      %p170 = pneg %p154
    $region27: #{tpu_custom_call.1} parent=1 // pred_check_branch
      %172 = sbr.rel (%p170) target = $region29
    $region28: #{tpu_custom_call.1} parent=1 // pred_region
      %v173 = vld [vmem:[#allocation2] sm:$0xff]
      %v174 = vld [vmem:[#allocation2 + $0x8] sm:$0xff]
      %175 = vst [vmem:[#allocation8] sm:$0xff] %v173
      %176 = vst [vmem:[#allocation8 + $0x8] sm:$0xff] %v174
    $region29: #{tpu_custom_call.1} parent=1 // pred_fallthru
      _
    // Predicated region
    $region30: #{tpu_custom_call.1} parent=1 // pred_check
      _
    $region31: #{tpu_custom_call.1} parent=1 // pred_check_branch
      %178 = sbr.rel (0) target = $region33
    $region32: #{tpu_custom_call.1} parent=1 // pred_region
      %s180 = ssub.s32 256, 256
      %181 = vsyncadd [#allocation5], %s180
      %s182 = sshll.u32 [#allocation8], 4
      %s183 = int_to_ptr.vmem [resolvable:$true] %s182
      %188 = dma.vmem_to_hbm [thread:$0]  %s183, 256, %s2, [#allocation5], 128, 128, 8
    $region33: #{tpu_custom_call.1} parent=1 // pred_fallthru
      _
    // Predicated region
    $region34: #{tpu_custom_call.1} parent=1 // pred_check
      _
    $region35: #{tpu_custom_call.1} parent=1 // pred_check_branch
      %190 = sbr.rel (0) target = $region37
    $region36: #{tpu_custom_call.1} parent=1 // pred_region
      %191 = dma.done [#allocation5], 256
    $region37: #{tpu_custom_call.1} parent=1 // pred_fallthru
      _
    %192 = vsyncpa [#allocation4], 1
    %193 = vsyncpa [#allocation7], 1
    %194 = vsyncpa [#allocation5], 1

</llo_original>
